<compile_context>
chip_gen: v7x
topology: tpu7x:2x2x1
jax: 0.10.0
libtpu: 0.0.40
codegen_flags: <defaults>
</compile_context>

<pallas_src>
import functools

import jax
import jax.numpy as jnp
from jax.experimental import pallas as pl
from jax.experimental.pallas import tpu as pltpu


# ------------------------------- constants --------------------------------- #

N_BATCH = 2
L_IN = 256
C1, C2 = 4, 16          # conv output channels
K = 5                   # conv / pool kernel size
STRIDE = 2
DIL = 2
NEG_SLOPE = 0.2
EPS = 1e-5

# parameter-slab layout (single HBM->VMEM DMA for every weight / bias / BN param)
_P_ROWS = 24            # rows 0:4  -> block-1 params, rows 8:24 -> block-2 params (8-aligned)
_P_COLS = K * C1 + 3    # 23 : conv-weight columns, then bias / gamma / beta columns

_VMEM = pl.BlockSpec(memory_space=pltpu.MemorySpace.VMEM)


# ------------------------------ fused kernel ------------------------------- #

def _downsampling_kernel(x_ref, p_ref, o_ref, *, n_batch, chunk,
                         t_c1, t_p1, t_c2, t_p2, lat1, lat2, p1_len, p2_len):
    """Whole DownSampling forward, all intermediates in VMEM/vregs.

    x_ref : (1, n_batch*chunk)   batch folded into lanes (chunk = 256 per sample)
    p_ref : (24, 23)             packed parameters (see wrapper)
    o_ref : (n_batch*C2, p2_len) final output; wrapper reshape to (N, C2, 11) is free.
    """
    # ---- parameter unpack (static slices of the single slab are free) ---- #
    w1 = p_ref[0:C1, 0:K]                       # (4, 5)
    b1 = p_ref[0:C1, K:K + 1]                   # (4, 1)
    g1 = p_ref[0:C1, K + 1:K + 2]
    be1 = p_ref[0:C1, K + 2:K + 3]
    w2 = p_ref[8:8 + C2, 0:K * C1]              # (16, 20)  [o, k*C1+c]
    b2 = p_ref[8:8 + C2, K * C1:K * C1 + 1]     # (16, 1)
    g2 = p_ref[8:8 + C2, K * C1 + 1:K * C1 + 2]
    be2 = p_ref[8:8 + C2, K * C1 + 2:K * C1 + 3]

    x = x_ref[...]                              # (1, 512)

    # ---------- block 1: Conv1d(1,4,5,s2,d2) as full-res dilated conv ---------- #
    # Taps sit at contiguous offsets DIL*k; one MXU contraction for the whole batch.
    patches1 = jnp.concatenate(
        [x[:, DIL * k:DIL * k + t_c1] for k in range(K)], axis=0)               # (5, 504)
    c1 = jnp.dot(w1, patches1, preferred_element_type=jnp.float32) + b1         # (4, 504)

    # MaxPool1d(5, 2) as a stride-1 dilated max (real outputs on the lat1 lattice).
    p1 = c1[:, 0:t_p1]
    for d in range(1, K):
        p1 = jnp.maximum(p1, c1[:, STRIDE * d:STRIDE * d + t_p1])               # (4, 496)

    # BatchNorm1d(4) batch statistics over the valid lattice only (iota mask,
    # chunk is a power of two so the per-sample position is a bitwise AND).
    pos1 = jax.lax.broadcasted_iota(jnp.int32, (1, t_p1), 1)
    j1 = pos1 & (chunk - 1)
    mask1 = jnp.where(((j1 & (lat1 - 1)) == 0) & (j1 < lat1 * p1_len), 1.0, 0.0)
    pm1 = p1 * mask1
    # fused sum / sum-of-squares: one cross-lane reduction (8 sublanes = one tile)
    st1 = jnp.sum(jnp.concatenate([pm1, pm1 * p1], axis=0), axis=1, keepdims=True)  # (8,1)
    inv1 = 1.0 / float(n_batch * p1_len)
    mean1 = st1[0:C1] * inv1
    var1 = st1[C1:2 * C1] * inv1 - mean1 * mean1          # biased variance (BN train)
    scale1 = g1 * jax.lax.rsqrt(var1 + EPS)               # (4, 1)
    shift1 = be1 - mean1 * scale1

    h1 = p1 * scale1 + shift1
    y1 = jnp.where(h1 > 0, h1, NEG_SLOPE * h1)            # LeakyReLU(0.2)   (4, 496)

    # ---------- block 2: Conv1d(4,16,5,s2,d2) on the lat1 lattice ---------- #
    # Full-res taps are 2*lat1 = 8 columns apart -> still contiguous slices.
    step2 = STRIDE * lat1                                                         # 8
    patches2 = jnp.concatenate(
        [y1[:, step2 * k:step2 * k + t_c2] for k in range(K)], axis=0)            # (20, 464)
    c2 = jnp.dot(w2, patches2, preferred_element_type=jnp.float32) + b2           # (16, 464)

    p2 = c2[:, 0:t_p2]
    for d in range(1, K):
        p2 = jnp.maximum(p2, c2[:, step2 * d:step2 * d + t_p2])                   # (16, 432)

    # ---------- in-kernel stride-lat2 compaction (constant 0/1 selection matmul) ------ #
    rr = jax.lax.broadcasted_iota(jnp.int32, (lat2 * p2_len, p2_len), 0)
    cc = jax.lax.broadcasted_iota(jnp.int32, (lat2 * p2_len, p2_len), 1)
    sel = jnp.where(rr == cc * lat2, 1.0, 0.0)                                    # (176, 11)

    pc = []
    for n in range(n_batch):                     # chunk offsets are 128-aligned (256*n)
        pc.append(jnp.dot(p2[:, n * chunk:n * chunk + lat2 * p2_len], sel,
                          preferred_element_type=jnp.float32))                    # (16, 11)
    pcat = jnp.concatenate(pc, axis=1)                                            # (16, 22)

    # BatchNorm1d(16) stats directly on the compacted lattice (no mask needed).
    st2 = jnp.sum(jnp.concatenate([pcat, pcat * pcat], axis=0), axis=1, keepdims=True)  # (32,1)
    inv2 = 1.0 / float(n_batch * p2_len)
    mean2 = st2[0:C2] * inv2
    var2 = st2[C2:2 * C2] * inv2 - mean2 * mean2
    scale2 = g2 * jax.lax.rsqrt(var2 + EPS)               # (16, 1)
    shift2 = be2 - mean2 * scale2

    # BN2 + LeakyReLU on the tiny compacted tiles, then store.
    for n in range(n_batch):
        h2 = pc[n] * scale2 + shift2
        o_ref[n * C2:(n + 1) * C2, :] = jnp.where(h2 > 0, h2, NEG_SLOPE * h2)     # (16, 11)


# -------------------------------- wrapper ----------------------------------- #

def downsampling_forward(x, params):
    """Forward pass of DownSampling.  x: (N, 1, 256) float32 -> (N, 16, 11)."""
    w1, b1, g1, be1, w2, b2, g2, be2 = params
    n_batch, cin, l_in = x.shape
    assert cin == 1 and (n_batch, l_in) == (N_BATCH, L_IN)

    chunk = l_in
    assert chunk & (chunk - 1) == 0, "per-sample chunk must be a power of two"
    assert STRIDE == 2 and DIL == 2, "lattice constants derived for stride=dilation=2"

    # True (strided) layer lengths.
    l1 = (l_in - DIL * (K - 1) - 1) // STRIDE + 1          # 124
    p1_len = (l1 - K) // 2 + 1                             # 60
    l2 = (p1_len - DIL * (K - 1) - 1) // STRIDE + 1        # 26
    p2_len = (l2 - K) // 2 + 1                             # 11

    # Full-resolution lattice strides and widths (dilated stride-1 formulation).
    lat1 = STRIDE * 2                                      # 4  (conv1 * pool1 stride)
    lat2 = lat1 * STRIDE * 2                               # 16
    t_c1 = n_batch * chunk - DIL * (K - 1)                 # 504
    t_p1 = t_c1 - STRIDE * (K - 1)                         # 496
    t_c2 = t_p1 - STRIDE * lat1 * (K - 1)                  # 464
    t_p2 = t_c2 - STRIDE * lat1 * (K - 1)                  # 432
    # Per-sample windows must stay inside one chunk (no cross-sample contamination).
    assert STRIDE * (l1 - 1) + DIL * (K - 1) + 1 <= chunk
    assert lat1 * (p1_len - 1) + STRIDE * (K - 1) + 1 <= chunk
    assert lat1 * STRIDE * (l2 - 1) + STRIDE * lat1 * (K - 1) + 1 <= chunk
    assert lat2 * (p2_len - 1) + STRIDE * lat1 * (K - 1) + 1 <= chunk
    assert lat2 * p2_len <= chunk and lat1 * p1_len <= chunk

    # One parameter slab -> one DMA.  Rows 0:4 = block 1, rows 8:24 = block 2.
    pslab = jnp.zeros((_P_ROWS, _P_COLS), jnp.float32)
    pslab = pslab.at[0:C1, 0:K].set(w1.reshape(C1, K))
    pslab = pslab.at[0:C1, K].set(b1)
    pslab = pslab.at[0:C1, K + 1].set(g1)
    pslab = pslab.at[0:C1, K + 2].set(be1)
    pslab = pslab.at[8:8 + C2, 0:K * C1].set(jnp.transpose(w2, (0, 2, 1)).reshape(C2, K * C1))
    pslab = pslab.at[8:8 + C2, K * C1].set(b2)
    pslab = pslab.at[8:8 + C2, K * C1 + 1].set(g2)
    pslab = pslab.at[8:8 + C2, K * C1 + 2].set(be2)

    kernel = functools.partial(
        _downsampling_kernel,
        n_batch=n_batch, chunk=chunk,
        t_c1=t_c1, t_p1=t_p1, t_c2=t_c2, t_p2=t_p2,
        lat1=lat1, lat2=lat2, p1_len=p1_len, p2_len=p2_len)

    flops = 2 * (C1 * K * t_c1 + C2 * (K * C1) * t_c2
                 + n_batch * C2 * (lat2 * p2_len) * p2_len)
    bytes_accessed = 4 * (n_batch * chunk + _P_ROWS * _P_COLS + n_batch * C2 * p2_len)

    out = pl.pallas_call(
        kernel,
        out_shape=jax.ShapeDtypeStruct((n_batch * C2, p2_len), jnp.float32),
        in_specs=[_VMEM, _VMEM],
        out_specs=_VMEM,
        cost_estimate=pl.CostEstimate(flops=flops, transcendentals=0,
                                      bytes_accessed=bytes_accessed),
    )(x.reshape(1, n_batch * chunk), pslab)

    # Free contiguous reshape (no strided gather dispatch).
    return out.reshape(n_batch, C2, p2_len)


# --------------------------- pure-JAX reference ------------------------------ #

def reference_forward(x, params):
    w1, b1, g1, be1, w2, b2, g2, be2 = params

    def conv(h, w, b):
        y = jax.lax.conv_general_dilated(
            h, w, window_strides=(STRIDE,), padding="VALID", rhs_dilation=(DIL,),
            dimension_numbers=("NCH", "OIH", "NCH"),
            precision=jax.lax.Precision.HIGHEST)
        return y + b[None, :, None]

    def pool(h):
        return jax.lax.reduce_window(h, -jnp.inf, jax.lax.max,
                                     (1, 1, 5), (1, 1, 2), "VALID")

    def bn(h, g, be):
        m = jnp.mean(h, axis=(0, 2), keepdims=True)
        v = jnp.mean((h - m) ** 2, axis=(0, 2), keepdims=True)
        return (h - m) / jnp.sqrt(v + EPS) * g[None, :, None] + be[None, :, None]

    def lrelu(h):
        return jnp.where(h > 0, h, NEG_SLOPE * h)

    h = lrelu(bn(pool(conv(x, w1, b1)), g1, be1))
    h = lrelu(bn(pool(conv(h, w2, b2)), g2, be2))
    return h


# ----------------------------------- main ------------------------------------ #

if __name__ == "__main__":
    key = jax.random.PRNGKey(0)
    kx, k1, k2, k3, k4 = jax.random.split(key, 5)

    # Deterministic synthetic parameters (shapes from the module's __init__).
    w1 = 0.1 * jax.random.normal(k1, (C1, 1, K), jnp.float32)     # Conv1d(1, 4, 5)
    b1 = 0.1 * jax.random.normal(k2, (C1,), jnp.float32)
    g1 = jnp.ones((C1,), jnp.float32)                             # BatchNorm1d(4)
    be1 = jnp.zeros((C1,), jnp.float32)
    w2 = 0.1 * jax.random.normal(k3, (C2, C1, K), jnp.float32)    # Conv1d(4, 16, 5)
    b2 = 0.1 * jax.random.normal(k4, (C2,), jnp.float32)
    g2 = jnp.ones((C2,), jnp.float32)                             # BatchNorm1d(16)
    be2 = jnp.zeros((C2,), jnp.float32)
    params = (w1, b1, g1, be1, w2, b2, g2, be2)

    # Input (N, 1, 256):  conv 124 -> pool 60 -> conv 26 -> pool 11.
    x = jax.random.normal(kx, (N_BATCH, 1, L_IN), jnp.float32)

    out = jax.block_until_ready(jax.jit(downsampling_forward)(x, params))
    ref = jax.block_until_ready(reference_forward(x, params))

    assert out.shape == (N_BATCH, C2, 11), out.shape
    err = float(jnp.max(jnp.abs(out - ref)))
    assert err < 1e-3, err

    print("KERNEL_OK")
</pallas_src>

<mosaic_0001>
module attributes {stable_mosaic.version = 11 : i64} {
  func.func @_downsampling_kernel(%arg0: memref<1x512xf32, #tpu.memory_space<vmem>>, %arg1: memref<24x23xf32, #tpu.memory_space<vmem>>, %arg2: memref<32x11xf32, #tpu.memory_space<vmem>>) attributes {dimension_semantics = [], scalar_prefetch = 0 : i64, scratch_operands = 0 : i64, tpu.core_type = #tpu.core_type<tc>} {
    %c0 = arith.constant 0 : index
    %c0_0 = arith.constant 0 : index
    %0 = vector.load %arg1[%c0, %c0_0] : memref<24x23xf32, #tpu.memory_space<vmem>>, vector<4x5xf32>
    %c0_1 = arith.constant 0 : index
    %c5 = arith.constant 5 : index
    %1 = vector.load %arg1[%c0_1, %c5] : memref<24x23xf32, #tpu.memory_space<vmem>>, vector<4x1xf32>
    %c0_2 = arith.constant 0 : index
    %c6 = arith.constant 6 : index
    %2 = vector.load %arg1[%c0_2, %c6] : memref<24x23xf32, #tpu.memory_space<vmem>>, vector<4x1xf32>
    %c0_3 = arith.constant 0 : index
    %c7 = arith.constant 7 : index
    %3 = vector.load %arg1[%c0_3, %c7] : memref<24x23xf32, #tpu.memory_space<vmem>>, vector<4x1xf32>
    %c8 = arith.constant 8 : index
    %c0_4 = arith.constant 0 : index
    %4 = vector.load %arg1[%c8, %c0_4] : memref<24x23xf32, #tpu.memory_space<vmem>>, vector<16x20xf32>
    %c8_5 = arith.constant 8 : index
    %c20 = arith.constant 20 : index
    %5 = vector.load %arg1[%c8_5, %c20] : memref<24x23xf32, #tpu.memory_space<vmem>>, vector<16x1xf32>
    %c8_6 = arith.constant 8 : index
    %c21 = arith.constant 21 : index
    %6 = vector.load %arg1[%c8_6, %c21] : memref<24x23xf32, #tpu.memory_space<vmem>>, vector<16x1xf32>
    %c8_7 = arith.constant 8 : index
    %c22 = arith.constant 22 : index
    %7 = vector.load %arg1[%c8_7, %c22] : memref<24x23xf32, #tpu.memory_space<vmem>>, vector<16x1xf32>
    %c0_8 = arith.constant 0 : index
    %c0_9 = arith.constant 0 : index
    %8 = vector.load %arg0[%c0_8, %c0_9] : memref<1x512xf32, #tpu.memory_space<vmem>>, vector<1x512xf32>
    %9 = vector.extract_strided_slice %8 {offsets = [0, 0], sizes = [1, 504], strides = [1, 1]} : vector<1x512xf32> to vector<1x504xf32>
    %10 = vector.extract_strided_slice %8 {offsets = [0, 2], sizes = [1, 504], strides = [1, 1]} : vector<1x512xf32> to vector<1x504xf32>
    %11 = vector.extract_strided_slice %8 {offsets = [0, 4], sizes = [1, 504], strides = [1, 1]} : vector<1x512xf32> to vector<1x504xf32>
    %12 = vector.extract_strided_slice %8 {offsets = [0, 6], sizes = [1, 504], strides = [1, 1]} : vector<1x512xf32> to vector<1x504xf32>
    %13 = vector.extract_strided_slice %8 {offsets = [0, 8], sizes = [1, 504], strides = [1, 1]} : vector<1x512xf32> to vector<1x504xf32>
    %14 = tpu.concatenate %9, %10, %11, %12, %13 in 0 : vector<1x504xf32>, vector<1x504xf32>, vector<1x504xf32>, vector<1x504xf32>, vector<1x504xf32> -> vector<5x504xf32>
    %cst = arith.constant dense<0.000000e+00> : vector<4x504xf32>
    %15 = tpu.matmul %0, %14, %cst {dimension_numbers = #tpu.dot_dimension_numbers<[1], [0], [0], [1], [0, 0, 1, 1], [], []>} : vector<4x5xf32>, vector<5x504xf32>, vector<4x504xf32> -> vector<4x504xf32>
    %16 = vector.broadcast %1 : vector<4x1xf32> to vector<4x504xf32>
    %17 = arith.addf %15, %16 : vector<4x504xf32>
    %18 = vector.extract_strided_slice %17 {offsets = [0, 0], sizes = [4, 496], strides = [1, 1]} : vector<4x504xf32> to vector<4x496xf32>
    %19 = vector.extract_strided_slice %17 {offsets = [0, 2], sizes = [4, 496], strides = [1, 1]} : vector<4x504xf32> to vector<4x496xf32>
    %20 = arith.maximumf %18, %19 : vector<4x496xf32>
    %21 = vector.extract_strided_slice %17 {offsets = [0, 4], sizes = [4, 496], strides = [1, 1]} : vector<4x504xf32> to vector<4x496xf32>
    %22 = arith.maximumf %20, %21 : vector<4x496xf32>
    %23 = vector.extract_strided_slice %17 {offsets = [0, 6], sizes = [4, 496], strides = [1, 1]} : vector<4x504xf32> to vector<4x496xf32>
    %24 = arith.maximumf %22, %23 : vector<4x496xf32>
    %25 = vector.extract_strided_slice %17 {offsets = [0, 8], sizes = [4, 496], strides = [1, 1]} : vector<4x504xf32> to vector<4x496xf32>
    %26 = arith.maximumf %24, %25 : vector<4x496xf32>
    %27 = tpu.iota {dimensions = array<i32: 1>} : vector<1x496xi32>
    %c255_i32 = arith.constant 255 : i32
    %28 = vector.broadcast %c255_i32 : i32 to vector<1x496xi32>
    %29 = arith.andi %27, %28 : vector<1x496xi32>
    %c3_i32 = arith.constant 3 : i32
    %30 = vector.broadcast %c3_i32 : i32 to vector<1x496xi32>
    %31 = arith.andi %29, %30 : vector<1x496xi32>
    %c0_i32 = arith.constant 0 : i32
    %32 = vector.broadcast %c0_i32 : i32 to vector<1x496xi32>
    %33 = arith.cmpi eq, %31, %32 : vector<1x496xi32>
    %c240_i32 = arith.constant 240 : i32
    %34 = vector.broadcast %c240_i32 : i32 to vector<1x496xi32>
    %35 = arith.cmpi slt, %29, %34 : vector<1x496xi32>
    %36 = arith.andi %33, %35 : vector<1x496xi1>
    %cst_10 = arith.constant 1.000000e+00 : f32
    %cst_11 = arith.constant 0.000000e+00 : f32
    %37 = vector.broadcast %cst_10 : f32 to vector<1x496xf32>
    %38 = vector.broadcast %cst_11 : f32 to vector<1x496xf32>
    %39 = arith.select %36, %37, %38 : vector<1x496xi1>, vector<1x496xf32>
    %40 = vector.broadcast %39 : vector<1x496xf32> to vector<4x496xf32>
    %41 = arith.mulf %26, %40 : vector<4x496xf32>
    %42 = arith.mulf %41, %26 : vector<4x496xf32>
    %43 = tpu.concatenate %41, %42 in 0 : vector<4x496xf32>, vector<4x496xf32> -> vector<8x496xf32>
    %cst_12 = arith.constant dense<0.000000e+00> : vector<8xf32>
    %44 = vector.multi_reduction <add>, %43, %cst_12 [1] : vector<8x496xf32> to vector<8xf32>
    %45 = vector.shape_cast %44 : vector<8xf32> to vector<8x1xf32>
    %46 = vector.extract_strided_slice %45 {offsets = [0, 0], sizes = [4, 1], strides = [1, 1]} : vector<8x1xf32> to vector<4x1xf32>
    %cst_13 = arith.constant 0.00833333377 : f32
    %47 = vector.broadcast %cst_13 : f32 to vector<4x1xf32>
    %48 = arith.mulf %46, %47 : vector<4x1xf32>
    %49 = vector.extract_strided_slice %45 {offsets = [4, 0], sizes = [4, 1], strides = [1, 1]} : vector<8x1xf32> to vector<4x1xf32>
    %cst_14 = arith.constant 0.00833333377 : f32
    %50 = vector.broadcast %cst_14 : f32 to vector<4x1xf32>
    %51 = arith.mulf %49, %50 : vector<4x1xf32>
    %52 = arith.mulf %48, %48 : vector<4x1xf32>
    %53 = arith.subf %51, %52 : vector<4x1xf32>
    %cst_15 = arith.constant 9.99999974E-6 : f32
    %54 = vector.broadcast %cst_15 : f32 to vector<4x1xf32>
    %55 = arith.addf %53, %54 : vector<4x1xf32>
    %56 = math.rsqrt %55 : vector<4x1xf32>
    %57 = arith.mulf %2, %56 : vector<4x1xf32>
    %58 = arith.mulf %48, %57 : vector<4x1xf32>
    %59 = arith.subf %3, %58 : vector<4x1xf32>
    %60 = vector.broadcast %57 : vector<4x1xf32> to vector<4x496xf32>
    %61 = arith.mulf %26, %60 : vector<4x496xf32>
    %62 = vector.broadcast %59 : vector<4x1xf32> to vector<4x496xf32>
    %63 = arith.addf %61, %62 : vector<4x496xf32>
    %cst_16 = arith.constant 0.000000e+00 : f32
    %64 = vector.broadcast %cst_16 : f32 to vector<4x496xf32>
    %65 = arith.cmpf ogt, %63, %64 : vector<4x496xf32>
    %cst_17 = arith.constant 2.000000e-01 : f32
    %66 = vector.broadcast %cst_17 : f32 to vector<4x496xf32>
    %67 = arith.mulf %66, %63 : vector<4x496xf32>
    %68 = arith.select %65, %63, %67 : vector<4x496xi1>, vector<4x496xf32>
    %69 = vector.extract_strided_slice %68 {offsets = [0, 0], sizes = [4, 464], strides = [1, 1]} : vector<4x496xf32> to vector<4x464xf32>
    %70 = vector.extract_strided_slice %68 {offsets = [0, 8], sizes = [4, 464], strides = [1, 1]} : vector<4x496xf32> to vector<4x464xf32>
    %71 = vector.extract_strided_slice %68 {offsets = [0, 16], sizes = [4, 464], strides = [1, 1]} : vector<4x496xf32> to vector<4x464xf32>
    %72 = vector.extract_strided_slice %68 {offsets = [0, 24], sizes = [4, 464], strides = [1, 1]} : vector<4x496xf32> to vector<4x464xf32>
    %73 = vector.extract_strided_slice %68 {offsets = [0, 32], sizes = [4, 464], strides = [1, 1]} : vector<4x496xf32> to vector<4x464xf32>
    %74 = tpu.concatenate %69, %70, %71, %72, %73 in 0 : vector<4x464xf32>, vector<4x464xf32>, vector<4x464xf32>, vector<4x464xf32>, vector<4x464xf32> -> vector<20x464xf32>
    %cst_18 = arith.constant dense<0.000000e+00> : vector<16x464xf32>
    %75 = tpu.matmul %4, %74, %cst_18 {dimension_numbers = #tpu.dot_dimension_numbers<[1], [0], [0], [1], [0, 0, 1, 1], [], []>} : vector<16x20xf32>, vector<20x464xf32>, vector<16x464xf32> -> vector<16x464xf32>
    %76 = vector.broadcast %5 : vector<16x1xf32> to vector<16x464xf32>
    %77 = arith.addf %75, %76 : vector<16x464xf32>
    %78 = vector.extract_strided_slice %77 {offsets = [0, 0], sizes = [16, 432], strides = [1, 1]} : vector<16x464xf32> to vector<16x432xf32>
    %79 = vector.extract_strided_slice %77 {offsets = [0, 8], sizes = [16, 432], strides = [1, 1]} : vector<16x464xf32> to vector<16x432xf32>
    %80 = arith.maximumf %78, %79 : vector<16x432xf32>
    %81 = vector.extract_strided_slice %77 {offsets = [0, 16], sizes = [16, 432], strides = [1, 1]} : vector<16x464xf32> to vector<16x432xf32>
    %82 = arith.maximumf %80, %81 : vector<16x432xf32>
    %83 = vector.extract_strided_slice %77 {offsets = [0, 24], sizes = [16, 432], strides = [1, 1]} : vector<16x464xf32> to vector<16x432xf32>
    %84 = arith.maximumf %82, %83 : vector<16x432xf32>
    %85 = vector.extract_strided_slice %77 {offsets = [0, 32], sizes = [16, 432], strides = [1, 1]} : vector<16x464xf32> to vector<16x432xf32>
    %86 = arith.maximumf %84, %85 : vector<16x432xf32>
    %87 = tpu.iota {dimensions = array<i32: 0>} : vector<176x11xi32>
    %88 = tpu.iota {dimensions = array<i32: 1>} : vector<176x11xi32>
    %c16_i32 = arith.constant 16 : i32
    %89 = vector.broadcast %c16_i32 : i32 to vector<176x11xi32>
    %90 = arith.muli %88, %89 : vector<176x11xi32>
    %91 = arith.cmpi eq, %87, %90 : vector<176x11xi32>
    %cst_19 = arith.constant 1.000000e+00 : f32
    %cst_20 = arith.constant 0.000000e+00 : f32
    %92 = vector.broadcast %cst_19 : f32 to vector<176x11xf32>
    %93 = vector.broadcast %cst_20 : f32 to vector<176x11xf32>
    %94 = arith.select %91, %92, %93 : vector<176x11xi1>, vector<176x11xf32>
    %95 = vector.extract_strided_slice %86 {offsets = [0, 0], sizes = [16, 176], strides = [1, 1]} : vector<16x432xf32> to vector<16x176xf32>
    %cst_21 = arith.constant dense<0.000000e+00> : vector<16x11xf32>
    %96 = tpu.matmul %95, %94, %cst_21 {dimension_numbers = #tpu.dot_dimension_numbers<[1], [0], [0], [1], [0, 0, 1, 1], [], []>} : vector<16x176xf32>, vector<176x11xf32>, vector<16x11xf32> -> vector<16x11xf32>
    %97 = vector.extract_strided_slice %86 {offsets = [0, 256], sizes = [16, 176], strides = [1, 1]} : vector<16x432xf32> to vector<16x176xf32>
    %cst_22 = arith.constant dense<0.000000e+00> : vector<16x11xf32>
    %98 = tpu.matmul %97, %94, %cst_22 {dimension_numbers = #tpu.dot_dimension_numbers<[1], [0], [0], [1], [0, 0, 1, 1], [], []>} : vector<16x176xf32>, vector<176x11xf32>, vector<16x11xf32> -> vector<16x11xf32>
    %99 = tpu.concatenate %96, %98 in 1 : vector<16x11xf32>, vector<16x11xf32> -> vector<16x22xf32>
    %100 = arith.mulf %99, %99 : vector<16x22xf32>
    %101 = tpu.concatenate %99, %100 in 0 : vector<16x22xf32>, vector<16x22xf32> -> vector<32x22xf32>
    %cst_23 = arith.constant dense<0.000000e+00> : vector<32xf32>
    %102 = vector.multi_reduction <add>, %101, %cst_23 [1] : vector<32x22xf32> to vector<32xf32>
    %103 = vector.shape_cast %102 : vector<32xf32> to vector<32x1xf32>
    %104 = vector.extract_strided_slice %103 {offsets = [0, 0], sizes = [16, 1], strides = [1, 1]} : vector<32x1xf32> to vector<16x1xf32>
    %cst_24 = arith.constant 0.0454545468 : f32
    %105 = vector.broadcast %cst_24 : f32 to vector<16x1xf32>
    %106 = arith.mulf %104, %105 : vector<16x1xf32>
    %107 = vector.extract_strided_slice %103 {offsets = [16, 0], sizes = [16, 1], strides = [1, 1]} : vector<32x1xf32> to vector<16x1xf32>
    %cst_25 = arith.constant 0.0454545468 : f32
    %108 = vector.broadcast %cst_25 : f32 to vector<16x1xf32>
    %109 = arith.mulf %107, %108 : vector<16x1xf32>
    %110 = arith.mulf %106, %106 : vector<16x1xf32>
    %111 = arith.subf %109, %110 : vector<16x1xf32>
    %cst_26 = arith.constant 9.99999974E-6 : f32
    %112 = vector.broadcast %cst_26 : f32 to vector<16x1xf32>
    %113 = arith.addf %111, %112 : vector<16x1xf32>
    %114 = math.rsqrt %113 : vector<16x1xf32>
    %115 = arith.mulf %6, %114 : vector<16x1xf32>
    %116 = arith.mulf %106, %115 : vector<16x1xf32>
    %117 = arith.subf %7, %116 : vector<16x1xf32>
    %118 = vector.broadcast %115 : vector<16x1xf32> to vector<16x11xf32>
    %119 = arith.mulf %96, %118 : vector<16x11xf32>
    %120 = vector.broadcast %117 : vector<16x1xf32> to vector<16x11xf32>
    %121 = arith.addf %119, %120 : vector<16x11xf32>
    %cst_27 = arith.constant 0.000000e+00 : f32
    %122 = vector.broadcast %cst_27 : f32 to vector<16x11xf32>
    %123 = arith.cmpf ogt, %121, %122 : vector<16x11xf32>
    %cst_28 = arith.constant 2.000000e-01 : f32
    %124 = vector.broadcast %cst_28 : f32 to vector<16x11xf32>
    %125 = arith.mulf %124, %121 : vector<16x11xf32>
    %126 = arith.select %123, %121, %125 : vector<16x11xi1>, vector<16x11xf32>
    %c0_29 = arith.constant 0 : index
    %c0_30 = arith.constant 0 : index
    %127 = vector.load %arg2[%c0_29, %c0_30] : memref<32x11xf32, #tpu.memory_space<vmem>>, vector<16x11xf32>
    tpu.vector_store %arg2[%c0_29, %c0_30], %126 {strides = array<i32>} : memref<32x11xf32, #tpu.memory_space<vmem>>, vector<16x11xf32>,
    %128 = vector.broadcast %115 : vector<16x1xf32> to vector<16x11xf32>
    %129 = arith.mulf %98, %128 : vector<16x11xf32>
    %130 = vector.broadcast %117 : vector<16x1xf32> to vector<16x11xf32>
    %131 = arith.addf %129, %130 : vector<16x11xf32>
    %cst_31 = arith.constant 0.000000e+00 : f32
    %132 = vector.broadcast %cst_31 : f32 to vector<16x11xf32>
    %133 = arith.cmpf ogt, %131, %132 : vector<16x11xf32>
    %cst_32 = arith.constant 2.000000e-01 : f32
    %134 = vector.broadcast %cst_32 : f32 to vector<16x11xf32>
    %135 = arith.mulf %134, %131 : vector<16x11xf32>
    %136 = arith.select %133, %131, %135 : vector<16x11xi1>, vector<16x11xf32>
    %c16 = arith.constant 16 : index
    %c0_33 = arith.constant 0 : index
    %137 = vector.load %arg2[%c16, %c0_33] : memref<32x11xf32, #tpu.memory_space<vmem>>, vector<16x11xf32>
    tpu.vector_store %arg2[%c16, %c0_33], %136 {strides = array<i32>} : memref<32x11xf32, #tpu.memory_space<vmem>>, vector<16x11xf32>,
    return
  }
}

</mosaic_0001>

<llo_original>
// kernel: downsampling_forward.1
$region0: #{downsampling_forward.1}
  #allocation0 [shape = 'u32[]', space=smem, size = 0x4, offset = 0x4, fixed_abs, tag = 'smem constant byte address 0x4 - core index']
  #allocation1 [shape = 'u32[144,128]{1,0:T(1,128)}', space=vmem, size = 0x12000, scoped, tag = 'internal scratch']
  %s0 = inlined_call_operand.vmem [shape: f32[1,512], index: 0, kind: input, shape index: {}]
  %s1 = inlined_call_operand.vmem [shape: f32[24,23], index: 1, kind: input, shape index: {}]
  %s2 = inlined_call_operand.vmem [shape: f32[32,11], index: 2, kind: output, shape index: {}]
  %s3 = sld [smem:[#allocation0]]
  $region18: #{downsampling_forward.1} parent=0
    _
  %s5 = ssub.s32 1, %s3
  %s6 = scalar_select 0, %s5, %s3
  // Predicated region
  $region2: #{downsampling_forward.1} parent=0 // pred_check
    _
  $region3: #{downsampling_forward.1} parent=0 // pred_check_branch
    %8 = sbr.rel (0) target = $region5
  $region4: #{downsampling_forward.1} parent=0 // pred_region
    _
  $region5: #{downsampling_forward.1} parent=0 // pred_fallthru
    _
  // Predicated region
  $region6: #{downsampling_forward.1} parent=0 // pred_check
    _
  $region7: #{downsampling_forward.1} parent=0 // pred_check_branch
    %10 = sbr.rel (0) target = $region9
  $region8: #{downsampling_forward.1} parent=0 // pred_region
    _
  $region9: #{downsampling_forward.1} parent=0 // pred_fallthru
    _
  %v11 = vld [vmem:[%s1] sm:$0xf]
  %v12 = vld [vmem:[%s1 + $0x8] sm:$0xff]
  %v13 = vld [vmem:[%s1 + $0x10] sm:$0xff]
  %v14 = vld [vmem:[%s0] sm:$0xf]
  %v16 = vlaneseq
  %v17 = vshrl.u32 %v16, 7
  %v18 = vsub.s32 0, %v17
  %v19 = vrot.slane %v14, %v18
  %v20 = vlaneseq
  %v21 = vshrl.u32 %v20, 7
  %v22 = vsub.s32 1, %v21
  %v23 = vrot.slane %v14, %v22
  %v24 = vlaneseq
  %v25 = vshrl.u32 %v24, 7
  %v26 = vsub.s32 2, %v25
  %v27 = vrot.slane %v14, %v26
  %v28 = vlaneseq
  %v29 = vshrl.u32 %v28, 7
  %v30 = vsub.s32 3, %v29
  %v31 = vrot.slane %v14, %v30
  %36 = vrot.lane.b32.xlu0 %v19, 126
  %v37 = vpop.permute.xlu0 %36
  %38 = vrot.lane.b32.xlu0 %v23, 126
  %v39 = vpop.permute.xlu0 %38
  %40 = vrot.lane.b32.xlu0 %v27, 126
  %v41 = vpop.permute.xlu0 %40
  %42 = vrot.lane.b32.xlu0 %v31, 126
  %v43 = vpop.permute.xlu0 %42
  %vm44 = vcmask 1031168
  %v45 = vsel %vm44, %v37, %v39
  %v46 = vsel %vm44, %v39, %v41
  %v47 = vsel %vm44, %v41, %v43
  %52 = vrot.lane.b32.xlu0 %v19, 124
  %v53 = vpop.permute.xlu0 %52
  %54 = vrot.lane.b32.xlu0 %v23, 124
  %v55 = vpop.permute.xlu0 %54
  %56 = vrot.lane.b32.xlu0 %v27, 124
  %v57 = vpop.permute.xlu0 %56
  %58 = vrot.lane.b32.xlu0 %v31, 124
  %v59 = vpop.permute.xlu0 %58
  %vm60 = vcmask 1014784
  %v61 = vsel %vm60, %v53, %v55
  %v62 = vsel %vm60, %v55, %v57
  %v63 = vsel %vm60, %v57, %v59
  %68 = vrot.lane.b32.xlu0 %v19, 122
  %v69 = vpop.permute.xlu0 %68
  %70 = vrot.lane.b32.xlu0 %v23, 122
  %v71 = vpop.permute.xlu0 %70
  %72 = vrot.lane.b32.xlu0 %v27, 122
  %v73 = vpop.permute.xlu0 %72
  %74 = vrot.lane.b32.xlu0 %v31, 122
  %v75 = vpop.permute.xlu0 %74
  %vm76 = vcmask 998400
  %v77 = vsel %vm76, %v69, %v71
  %v78 = vsel %vm76, %v71, %v73
  %v79 = vsel %vm76, %v73, %v75
  %84 = vrot.lane.b32.xlu0 %v19, 120
  %v85 = vpop.permute.xlu0 %84
  %86 = vrot.lane.b32.xlu0 %v23, 120
  %v87 = vpop.permute.xlu0 %86
  %88 = vrot.lane.b32.xlu0 %v27, 120
  %v89 = vpop.permute.xlu0 %88
  %90 = vrot.lane.b32.xlu0 %v31, 120
  %v91 = vpop.permute.xlu0 %90
  %vm92 = vcmask 982016
  %v93 = vsel %vm92, %v85, %v87
  %v94 = vsel %vm92, %v87, %v89
  %v95 = vsel %vm92, %v89, %v91
  %vm100 = vcmask 1040384
  %v101 = vsel %vm100, %v19, %v45
  %v102 = vsel %vm100, %v23, %v46
  %v103 = vsel %vm100, %v27, %v47
  %v104 = vsel %vm100, %v31, %v43
  %vm105 = vcmask 1041408
  %v106 = vsel %vm105, %v101, %v61
  %v107 = vsel %vm105, %v102, %v62
  %v108 = vsel %vm105, %v103, %v63
  %v109 = vsel %vm105, %v104, %v59
  %vm110 = vcmask 1042432
  %v111 = vsel %vm110, %v106, %v77
  %v112 = vsel %vm110, %v107, %v78
  %v113 = vsel %vm110, %v108, %v79
  %v114 = vsel %vm110, %v109, %v75
  %vm115 = vcmask 1043456
  %v116 = vsel %vm115, %v111, %v93
  %v117 = vsel %vm115, %v112, %v94
  %v118 = vsel %vm115, %v113, %v95
  %v119 = vsel %vm115, %v114, %v91
  %121 = vset.pattern.permute.xlu0 5
  %122 = vperm.xlu0 %121, %v11
  %v123 = vpop.permute.xlu0 %122
  %vm125 = vcmask 39936
  %v126 = vsel %vm125, %v11, 0
  %vm128 = vcmask 1044480
  %v130 = vsel %vm128, %v116, 0
  %v133 = vsel %vm128, %v117, 0
  %v136 = vsel %vm128, %v118, 0
  %v139 = vsel %vm128, %v119, 0
  %141 = vmatprep.subr.mxu0 %v133
  %142 = vmatpush1.msra.mxu0 %v130
  %143 = vmatprep.subr.mxu0 0.0
  %144 = vmatpush1.msra.mxu0 0.0
  %145 = vmatprep.subr.mxu0 0.0
  %146 = vmatpush1.msra.mxu0 0.0
  %147 = vmatprep.subr.mxu0 0.0
  %148 = vmatpush1.msra.mxu0 0.0
  %149 = vmatprep.subr.mxu0 0.0
  %150 = vmatpush1.msra.mxu0 0.0
  %151 = vmatprep.subr.mxu0 0.0
  %152 = vmatpush1.msra.mxu0 0.0
  %153 = vmatprep.subr.mxu0 0.0
  %154 = vmatpush1.msra.mxu0 0.0
  %155 = vmatprep.subr.mxu0 0.0
  %156 = vmatpush1.msra.mxu0 0.0
  %157 = vmatprep.subr.mxu0 0.0
  %158 = vmatpush1.msra.mxu0 0.0
  %159 = vmatprep.subr.mxu0 0.0
  %160 = vmatpush1.msra.mxu0 0.0
  %161 = vmatprep.subr.mxu0 0.0
  %162 = vmatpush1.msra.mxu0 0.0
  %163 = vmatprep.subr.mxu0 0.0
  %164 = vmatpush1.msra.mxu0 0.0
  %165 = vmatprep.subr.mxu0 0.0
  %166 = vmatpush1.msra.mxu0 0.0
  %167 = vmatprep.subr.mxu0 0.0
  %168 = vmatpush1.msra.mxu0 0.0
  %169 = vmatprep.subr.mxu0 0.0
  %170 = vmatpush1.msra.mxu0 0.0
  %171 = vmatprep.subr.mxu0 0.0
  %172 = vmatpush1.msra.mxu0 0.0
  %173 = vmatprep.subr.mxu0 0.0
  %174 = vmatpush1.msra.mxu0 0.0
  %175 = vmatprep.subr.mxu0 0.0
  %176 = vmatpush1.msra.mxu0 0.0
  %177 = vmatprep.subr.mxu0 0.0
  %178 = vmatpush1.msra.mxu0 0.0
  %179 = vmatprep.subr.mxu0 0.0
  %180 = vmatpush1.msra.mxu0 0.0
  %181 = vmatprep.subr.mxu0 0.0
  %182 = vmatpush1.msra.mxu0 0.0
  %183 = vmatprep.subr.mxu0 0.0
  %184 = vmatpush1.msra.mxu0 0.0
  %185 = vmatprep.subr.mxu0 0.0
  %186 = vmatpush1.msra.mxu0 0.0
  %187 = vmatprep.subr.mxu0 0.0
  %188 = vmatpush1.msra.mxu0 0.0
  %189 = vmatprep.subr.mxu0 0.0
  %190 = vmatpush1.msra.mxu0 0.0
  %191 = vmatprep.subr.mxu0 0.0
  %192 = vmatpush1.msra.mxu0 0.0
  %193 = vmatprep.subr.mxu0 0.0
  %194 = vmatpush1.msra.mxu0 0.0
  %195 = vmatprep.subr.mxu0 0.0
  %196 = vmatpush1.msra.mxu0 0.0
  %197 = vmatprep.subr.mxu0 0.0
  %198 = vmatpush1.msra.mxu0 0.0
  %199 = vmatprep.subr.mxu0 0.0
  %200 = vmatpush1.msra.mxu0 0.0
  %201 = vmatprep.subr.mxu0 0.0
  %202 = vmatpush1.msra.mxu0 0.0
  %203 = vmatprep.subr.mxu0 0.0
  %204 = vmatpush1.msra.mxu0 0.0
  %205 = vmatprep.mubr.f32.mxu0 0.0
  %206 = vmatmul.mubr.f32.gmra.mrb[0].mxu0 %v126
  %v207 = vpop.f32.mrb[0].mxu0
  %v208 = vadd.f32 %v123, %v207
  %v209 = vpop.f32.mrb[0].mxu0
  %v210 = vadd.f32 %v123, %v209
  %211 = vdwg.mxu0
  %212 = vmatprep.subr.mxu0 %v139
  %213 = vmatpush1.msra.mxu0 %v136
  %214 = vmatprep.subr.mxu0 0.0
  %215 = vmatpush1.msra.mxu0 0.0
  %216 = vmatprep.subr.mxu0 0.0
  %217 = vmatpush1.msra.mxu0 0.0
  %218 = vmatprep.subr.mxu0 0.0
  %219 = vmatpush1.msra.mxu0 0.0
  %220 = vmatprep.subr.mxu0 0.0
  %221 = vmatpush1.msra.mxu0 0.0
  %222 = vmatprep.subr.mxu0 0.0
  %223 = vmatpush1.msra.mxu0 0.0
  %224 = vmatprep.subr.mxu0 0.0
  %225 = vmatpush1.msra.mxu0 0.0
  %226 = vmatprep.subr.mxu0 0.0
  %227 = vmatpush1.msra.mxu0 0.0
  %228 = vmatprep.subr.mxu0 0.0
  %229 = vmatpush1.msra.mxu0 0.0
  %230 = vmatprep.subr.mxu0 0.0
  %231 = vmatpush1.msra.mxu0 0.0
  %232 = vmatprep.subr.mxu0 0.0
  %233 = vmatpush1.msra.mxu0 0.0
  %234 = vmatprep.subr.mxu0 0.0
  %235 = vmatpush1.msra.mxu0 0.0
  %236 = vmatprep.subr.mxu0 0.0
  %237 = vmatpush1.msra.mxu0 0.0
  %238 = vmatprep.subr.mxu0 0.0
  %239 = vmatpush1.msra.mxu0 0.0
  %240 = vmatprep.subr.mxu0 0.0
  %241 = vmatpush1.msra.mxu0 0.0
  %242 = vmatprep.subr.mxu0 0.0
  %243 = vmatpush1.msra.mxu0 0.0
  %244 = vmatprep.subr.mxu0 0.0
  %245 = vmatpush1.msra.mxu0 0.0
  %246 = vmatprep.subr.mxu0 0.0
  %247 = vmatpush1.msra.mxu0 0.0
  %248 = vmatprep.subr.mxu0 0.0
  %249 = vmatpush1.msra.mxu0 0.0
  %250 = vmatprep.subr.mxu0 0.0
  %251 = vmatpush1.msra.mxu0 0.0
  %252 = vmatprep.subr.mxu0 0.0
  %253 = vmatpush1.msra.mxu0 0.0
  %254 = vmatprep.subr.mxu0 0.0
  %255 = vmatpush1.msra.mxu0 0.0
  %256 = vmatprep.subr.mxu0 0.0
  %257 = vmatpush1.msra.mxu0 0.0
  %258 = vmatprep.subr.mxu0 0.0
  %259 = vmatpush1.msra.mxu0 0.0
  %260 = vmatprep.subr.mxu0 0.0
  %261 = vmatpush1.msra.mxu0 0.0
  %262 = vmatprep.subr.mxu0 0.0
  %263 = vmatpush1.msra.mxu0 0.0
  %264 = vmatprep.subr.mxu0 0.0
  %265 = vmatpush1.msra.mxu0 0.0
  %266 = vmatprep.subr.mxu0 0.0
  %267 = vmatpush1.msra.mxu0 0.0
  %268 = vmatprep.subr.mxu0 0.0
  %269 = vmatpush1.msra.mxu0 0.0
  %270 = vmatprep.subr.mxu0 0.0
  %271 = vmatpush1.msra.mxu0 0.0
  %272 = vmatprep.subr.mxu0 0.0
  %273 = vmatpush1.msra.mxu0 0.0
  %274 = vmatprep.subr.mxu0 0.0
  %275 = vmatpush1.msra.mxu0 0.0
  %276 = vmatprep.mubr.f32.mxu0 0.0
  %277 = vmatmul.mubr.f32.gmra.mrb[0].mxu0 %v126
  %v278 = vpop.f32.mrb[0].mxu0
  %v279 = vadd.f32 %v123, %v278
  %v280 = vpop.f32.mrb[0].mxu0
  %v281 = vadd.f32 %v123, %v280
  %282 = vdwg.mxu0
  %287 = vrot.lane.b32.xlu0 %v208, 126
  %v288 = vpop.permute.xlu0 %287
  %289 = vrot.lane.b32.xlu0 %v210, 126
  %v290 = vpop.permute.xlu0 %289
  %291 = vrot.lane.b32.xlu0 %v279, 126
  %v292 = vpop.permute.xlu0 %291
  %293 = vrot.lane.b32.xlu0 %v281, 126
  %v294 = vpop.permute.xlu0 %293
  %v295 = vsel %vm44, %v288, %v290
  %v296 = vsel %vm44, %v290, %v292
  %v297 = vsel %vm44, %v292, %v294
  %v302 = vmax.f32 %v208, %v295
  %v303 = vmax.f32 %v210, %v296
  %v304 = vmax.f32 %v279, %v297
  %v305 = vmax.f32 %v281, %v294
  %306 = vrot.lane.b32.xlu0 %v208, 124
  %v307 = vpop.permute.xlu0 %306
  %308 = vrot.lane.b32.xlu0 %v210, 124
  %v309 = vpop.permute.xlu0 %308
  %310 = vrot.lane.b32.xlu0 %v279, 124
  %v311 = vpop.permute.xlu0 %310
  %312 = vrot.lane.b32.xlu0 %v281, 124
  %v313 = vpop.permute.xlu0 %312
  %v314 = vsel %vm60, %v307, %v309
  %v315 = vsel %vm60, %v309, %v311
  %v316 = vsel %vm60, %v311, %v313
  %v321 = vmax.f32 %v302, %v314
  %v322 = vmax.f32 %v303, %v315
  %v323 = vmax.f32 %v304, %v316
  %v324 = vmax.f32 %v305, %v313
  %325 = vrot.lane.b32.xlu0 %v208, 122
  %v326 = vpop.permute.xlu0 %325
  %327 = vrot.lane.b32.xlu0 %v210, 122
  %v328 = vpop.permute.xlu0 %327
  %329 = vrot.lane.b32.xlu0 %v279, 122
  %v330 = vpop.permute.xlu0 %329
  %331 = vrot.lane.b32.xlu0 %v281, 122
  %v332 = vpop.permute.xlu0 %331
  %v333 = vsel %vm76, %v326, %v328
  %v334 = vsel %vm76, %v328, %v330
  %v335 = vsel %vm76, %v330, %v332
  %v340 = vmax.f32 %v321, %v333
  %v341 = vmax.f32 %v322, %v334
  %v342 = vmax.f32 %v323, %v335
  %v343 = vmax.f32 %v324, %v332
  %344 = vrot.lane.b32.xlu0 %v208, 120
  %v345 = vpop.permute.xlu0 %344
  %346 = vrot.lane.b32.xlu0 %v210, 120
  %v347 = vpop.permute.xlu0 %346
  %348 = vrot.lane.b32.xlu0 %v279, 120
  %v349 = vpop.permute.xlu0 %348
  %350 = vrot.lane.b32.xlu0 %v281, 120
  %v351 = vpop.permute.xlu0 %350
  %v352 = vsel %vm92, %v345, %v347
  %v353 = vsel %vm92, %v347, %v349
  %v354 = vsel %vm92, %v349, %v351
  %v359 = vmax.f32 %v340, %v352
  %v360 = vmax.f32 %v341, %v353
  %v361 = vmax.f32 %v342, %v354
  %v362 = vmax.f32 %v343, %v351
  %v363 = vlaneseq
  %v364 = vand.u32 %v363, 127
  %v365 = vadd.s32 %v364, 128
  %v366 = vadd.s32 %v364, 256
  %v367 = vadd.s32 %v364, 384
  %v368 = vand.u32 %v364, 255
  %v369 = vand.u32 %v365, 255
  %v370 = vand.u32 %v366, 255
  %v371 = vand.u32 %v367, 255
  %v372 = vand.u32 %v368, 3
  %v373 = vand.u32 %v369, 3
  %v374 = vand.u32 %v370, 3
  %v375 = vand.u32 %v371, 3
  %vm376 = vcmp.eq.s32.totalorder %v372, 0
  %vm377 = vcmp.eq.s32.totalorder %v373, 0
  %vm378 = vcmp.eq.s32.totalorder %v374, 0
  %vm379 = vcmp.eq.s32.totalorder %v375, 0
  %vm380 = vcmp.lt.s32.totalorder %v368, 240
  %vm381 = vcmp.lt.s32.totalorder %v369, 240
  %vm382 = vcmp.lt.s32.totalorder %v370, 240
  %vm383 = vcmp.lt.s32.totalorder %v371, 240
  %vm384 = vmand %vm376, %vm380
  %vm385 = vmand %vm377, %vm381
  %vm386 = vmand %vm378, %vm382
  %vm387 = vmand %vm379, %vm383
  %v388 = vsel %vm384, 1.0, 0.0
  %v389 = vsel %vm385, 1.0, 0.0
  %v390 = vsel %vm386, 1.0, 0.0
  %v391 = vsel %vm387, 1.0, 0.0
  %v392 = vmul.f32 %v359, %v388
  %v393 = vmul.f32 %v360, %v389
  %v394 = vmul.f32 %v361, %v390
  %v395 = vmul.f32 %v362, %v391
  %v396 = vmul.f32 %v392, %v359
  %v397 = vmul.f32 %v393, %v360
  %v398 = vmul.f32 %v394, %v361
  %v399 = vmul.f32 %v395, %v362
  %v404 = vrot.slane %v396, 4
  %v405 = vrot.slane %v397, 4
  %v406 = vrot.slane %v398, 4
  %v407 = vrot.slane %v399, 4
  %v412 = vsel %vm115, %v392, %v404
  %v413 = vsel %vm115, %v393, %v405
  %v414 = vsel %vm115, %v394, %v406
  %v415 = vsel %vm115, %v395, %v407
  %v416 = vadd.f32 %v412, %v413
  %v417 = vadd.f32 %v416, %v414
  %vm418 = vcmask 916480
  %v419 = vsel %vm418, %v415, 0.0
  %v420 = vadd.f32 %v417, %v419
  %421 = vadd.xlane.f32.xlu0 %v420
  %v422 = vpop.xlane.xlu0 %421
  %v423 = vmul.f32 %v422, 0.008333334
  %v424 = vmul.f32 %v423, %v423
  %v426 = vrot.slane %v424, 4
  %v428 = vsub.f32 %v423, %v426
  %v429 = vadd.f32 %v428, 1e-05
  %v430 = vrsqrt.pop %v429
  %v432 = vrot.slane %v430, 4
  %433 = vrot.lane.b32.xlu0 %v432, 6
  %v434 = vpop.permute.xlu0 %433
  %v436 = vmul.f32 %v11, %v434
  %v437 = vmul.f32 %v423, %v436
  %439 = vrot.lane.b32.xlu0 %v437, 1
  %v440 = vpop.permute.xlu0 %439
  %v442 = vsub.f32 %v11, %v440
  %444 = vset.pattern.permute.xlu0 6
  %445 = vperm.xlu0 %444, %v436
  %v446 = vpop.permute.xlu0 %445
  %v448 = vmul.f32 %v359, %v446
  %v449 = vmul.f32 %v360, %v446
  %v450 = vmul.f32 %v361, %v446
  %v451 = vmul.f32 %v362, %v446
  %453 = vset.pattern.permute.xlu0 7
  %454 = vperm.xlu0 %453, %v442
  %v455 = vpop.permute.xlu0 %454
  %v457 = vadd.f32 %v448, %v455
  %v458 = vadd.f32 %v449, %v455
  %v459 = vadd.f32 %v450, %v455
  %v460 = vadd.f32 %v451, %v455
  %vm461 = vcmp.gt.f32.partialorder %v457, 0.0
  %vm462 = vcmp.gt.f32.partialorder %v458, 0.0
  %vm463 = vcmp.gt.f32.partialorder %v459, 0.0
  %vm464 = vcmp.gt.f32.partialorder %v460, 0.0
  %v465 = vmul.f32 %v457, 0.2
  %v466 = vmul.f32 %v458, 0.2
  %v467 = vmul.f32 %v459, 0.2
  %v468 = vmul.f32 %v460, 0.2
  %v469 = vsel %vm461, %v457, %v465
  %v470 = vsel %vm462, %v458, %v466
  %v471 = vsel %vm463, %v459, %v467
  %v472 = vsel %vm464, %v460, %v468
  %v477 = vrot.slane %v469, 4
  %v478 = vrot.slane %v470, 4
  %v479 = vrot.slane %v471, 4
  %v480 = vrot.slane %v472, 4
  %481 = vrot.lane.b32.xlu0 %v477, 120
  %v482 = vpop.permute.xlu0 %481
  %483 = vrot.lane.b32.xlu0 %v478, 120
  %v484 = vpop.permute.xlu0 %483
  %485 = vrot.lane.b32.xlu0 %v479, 120
  %v486 = vpop.permute.xlu0 %485
  %487 = vrot.lane.b32.xlu0 %v480, 120
  %v488 = vpop.permute.xlu0 %487
  %v489 = vsel %vm92, %v482, %v484
  %v490 = vsel %vm92, %v484, %v486
  %v491 = vsel %vm92, %v486, %v488
  %496 = vrot.lane.b32.xlu0 %v469, 112
  %v497 = vpop.permute.xlu0 %496
  %498 = vrot.lane.b32.xlu0 %v470, 112
  %v499 = vpop.permute.xlu0 %498
  %500 = vrot.lane.b32.xlu0 %v471, 112
  %v501 = vpop.permute.xlu0 %500
  %502 = vrot.lane.b32.xlu0 %v472, 112
  %v503 = vpop.permute.xlu0 %502
  %v504 = vsel %vm418, %v497, %v499
  %v505 = vsel %vm418, %v499, %v501
  %v506 = vsel %vm418, %v501, %v503
  %511 = vrot.lane.b32.xlu0 %v477, 104
  %v512 = vpop.permute.xlu0 %511
  %513 = vrot.lane.b32.xlu0 %v478, 104
  %v514 = vpop.permute.xlu0 %513
  %515 = vrot.lane.b32.xlu0 %v479, 104
  %v516 = vpop.permute.xlu0 %515
  %517 = vrot.lane.b32.xlu0 %v480, 104
  %v518 = vpop.permute.xlu0 %517
  %vm519 = vcmask 850944
  %v520 = vsel %vm519, %v512, %v514
  %v521 = vsel %vm519, %v514, %v516
  %v522 = vsel %vm519, %v516, %v518
  %527 = vrot.lane.b32.xlu0 %v469, 96
  %v528 = vpop.permute.xlu0 %527
  %529 = vrot.lane.b32.xlu0 %v470, 96
  %v530 = vpop.permute.xlu0 %529
  %531 = vrot.lane.b32.xlu0 %v471, 96
  %v532 = vpop.permute.xlu0 %531
  %533 = vrot.lane.b32.xlu0 %v472, 96
  %v534 = vpop.permute.xlu0 %533
  %vm535 = vcmask 785408
  %v536 = vsel %vm535, %v528, %v530
  %v537 = vsel %vm535, %v530, %v532
  %v538 = vsel %vm535, %v532, %v534
  %v539 = vsel %vm115, %v469, %v489
  %v540 = vsel %vm115, %v470, %v490
  %v541 = vsel %vm115, %v471, %v491
  %v542 = vsel %vm115, %v472, %v488
  %v543 = vsel %vm115, %v504, %v520
  %v544 = vsel %vm115, %v505, %v521
  %v545 = vsel %vm115, %v506, %v522
  %v546 = vsel %vm115, %v503, %v518
  %548 = vset.pattern.permute.xlu0 20
  %549 = vperm.xlu0 %548, %v12
  %v550 = vpop.permute.xlu0 %549
  %553 = vset.pattern.permute.xlu0 20
  %554 = vperm.xlu0 %553, %v13
  %v555 = vpop.permute.xlu0 %554
  %vm557 = vcmask 162816
  %v558 = vsel %vm557, %v12, 0
  %v560 = vsel %vm557, %v13, 0
  %v562 = vsel %vm115, %v536, 0
  %v564 = vsel %vm115, %v537, 0
  %v566 = vsel %vm115, %v538, 0
  %v568 = vsel %vm115, %v534, 0
  %570 = vmatprep.subr.mxu0 %v540
  %571 = vmatpush1.msra.mxu0 %v539
  %572 = vmatprep.subr.mxu0 %v544
  %573 = vmatpush1.msra.mxu0 %v543
  %574 = vmatprep.subr.mxu0 %v564
  %575 = vmatpush1.msra.mxu0 %v562
  %576 = vmatprep.subr.mxu0 0.0
  %577 = vmatpush1.msra.mxu0 0.0
  %578 = vmatprep.subr.mxu0 0.0
  %579 = vmatpush1.msra.mxu0 0.0
  %580 = vmatprep.subr.mxu0 0.0
  %581 = vmatpush1.msra.mxu0 0.0
  %582 = vmatprep.subr.mxu0 0.0
  %583 = vmatpush1.msra.mxu0 0.0
  %584 = vmatprep.subr.mxu0 0.0
  %585 = vmatpush1.msra.mxu0 0.0
  %586 = vmatprep.subr.mxu0 0.0
  %587 = vmatpush1.msra.mxu0 0.0
  %588 = vmatprep.subr.mxu0 0.0
  %589 = vmatpush1.msra.mxu0 0.0
  %590 = vmatprep.subr.mxu0 0.0
  %591 = vmatpush1.msra.mxu0 0.0
  %592 = vmatprep.subr.mxu0 0.0
  %593 = vmatpush1.msra.mxu0 0.0
  %594 = vmatprep.subr.mxu0 0.0
  %595 = vmatpush1.msra.mxu0 0.0
  %596 = vmatprep.subr.mxu0 0.0
  %597 = vmatpush1.msra.mxu0 0.0
  %598 = vmatprep.subr.mxu0 0.0
  %599 = vmatpush1.msra.mxu0 0.0
  %600 = vmatprep.subr.mxu0 0.0
  %601 = vmatpush1.msra.mxu0 0.0
  %602 = vmatprep.subr.mxu0 0.0
  %603 = vmatpush1.msra.mxu0 0.0
  %604 = vmatprep.subr.mxu0 0.0
  %605 = vmatpush1.msra.mxu0 0.0
  %606 = vmatprep.subr.mxu0 0.0
  %607 = vmatpush1.msra.mxu0 0.0
  %608 = vmatprep.subr.mxu0 0.0
  %609 = vmatpush1.msra.mxu0 0.0
  %610 = vmatprep.subr.mxu0 0.0
  %611 = vmatpush1.msra.mxu0 0.0
  %612 = vmatprep.subr.mxu0 0.0
  %613 = vmatpush1.msra.mxu0 0.0
  %614 = vmatprep.subr.mxu0 0.0
  %615 = vmatpush1.msra.mxu0 0.0
  %616 = vmatprep.subr.mxu0 0.0
  %617 = vmatpush1.msra.mxu0 0.0
  %618 = vmatprep.subr.mxu0 0.0
  %619 = vmatpush1.msra.mxu0 0.0
  %620 = vmatprep.subr.mxu0 0.0
  %621 = vmatpush1.msra.mxu0 0.0
  %622 = vmatprep.subr.mxu0 0.0
  %623 = vmatpush1.msra.mxu0 0.0
  %624 = vmatprep.subr.mxu0 0.0
  %625 = vmatpush1.msra.mxu0 0.0
  %626 = vmatprep.subr.mxu0 0.0
  %627 = vmatpush1.msra.mxu0 0.0
  %628 = vmatprep.subr.mxu0 0.0
  %629 = vmatpush1.msra.mxu0 0.0
  %630 = vmatprep.subr.mxu0 0.0
  %631 = vmatpush1.msra.mxu0 0.0
  %632 = vmatprep.subr.mxu0 0.0
  %633 = vmatpush1.msra.mxu0 0.0
  %634 = vmatprep.mubr.f32.mxu0 0.0
  %635 = vmatmul.mubr.f32.gmra.mrb[0].mxu0 %v558
  %v636 = vpop.f32.mrb[0].mxu0
  %v637 = vadd.f32 %v550, %v636
  %v638 = vpop.f32.mrb[0].mxu0
  %v639 = vadd.f32 %v550, %v638
  %640 = vmatprep.mubr.f32.mxu0 0.0
  %641 = vmatmul.mubr.f32.gmra.mrb[0].mxu0 %v560
  %v642 = vpop.f32.mrb[0].mxu0
  %v643 = vadd.f32 %v555, %v642
  %v644 = vpop.f32.mrb[0].mxu0
  %v645 = vadd.f32 %v555, %v644
  %646 = vdwg.mxu0
  %647 = vmatprep.subr.mxu0 %v542
  %648 = vmatpush1.msra.mxu0 %v541
  %649 = vmatprep.subr.mxu0 %v546
  %650 = vmatpush1.msra.mxu0 %v545
  %651 = vmatprep.subr.mxu0 %v568
  %652 = vmatpush1.msra.mxu0 %v566
  %653 = vmatprep.subr.mxu0 0.0
  %654 = vmatpush1.msra.mxu0 0.0
  %655 = vmatprep.subr.mxu0 0.0
  %656 = vmatpush1.msra.mxu0 0.0
  %657 = vmatprep.subr.mxu0 0.0
  %658 = vmatpush1.msra.mxu0 0.0
  %659 = vmatprep.subr.mxu0 0.0
  %660 = vmatpush1.msra.mxu0 0.0
  %661 = vmatprep.subr.mxu0 0.0
  %662 = vmatpush1.msra.mxu0 0.0
  %663 = vmatprep.subr.mxu0 0.0
  %664 = vmatpush1.msra.mxu0 0.0
  %665 = vmatprep.subr.mxu0 0.0
  %666 = vmatpush1.msra.mxu0 0.0
  %667 = vmatprep.subr.mxu0 0.0
  %668 = vmatpush1.msra.mxu0 0.0
  %669 = vmatprep.subr.mxu0 0.0
  %670 = vmatpush1.msra.mxu0 0.0
  %671 = vmatprep.subr.mxu0 0.0
  %672 = vmatpush1.msra.mxu0 0.0
  %673 = vmatprep.subr.mxu0 0.0
  %674 = vmatpush1.msra.mxu0 0.0
  %675 = vmatprep.subr.mxu0 0.0
  %676 = vmatpush1.msra.mxu0 0.0
  %677 = vmatprep.subr.mxu0 0.0
  %678 = vmatpush1.msra.mxu0 0.0
  %679 = vmatprep.subr.mxu0 0.0
  %680 = vmatpush1.msra.mxu0 0.0
  %681 = vmatprep.subr.mxu0 0.0
  %682 = vmatpush1.msra.mxu0 0.0
  %683 = vmatprep.subr.mxu0 0.0
  %684 = vmatpush1.msra.mxu0 0.0
  %685 = vmatprep.subr.mxu0 0.0
  %686 = vmatpush1.msra.mxu0 0.0
  %687 = vmatprep.subr.mxu0 0.0
  %688 = vmatpush1.msra.mxu0 0.0
  %689 = vmatprep.subr.mxu0 0.0
  %690 = vmatpush1.msra.mxu0 0.0
  %691 = vmatprep.subr.mxu0 0.0
  %692 = vmatpush1.msra.mxu0 0.0
  %693 = vmatprep.subr.mxu0 0.0
  %694 = vmatpush1.msra.mxu0 0.0
  %695 = vmatprep.subr.mxu0 0.0
  %696 = vmatpush1.msra.mxu0 0.0
  %697 = vmatprep.subr.mxu0 0.0
  %698 = vmatpush1.msra.mxu0 0.0
  %699 = vmatprep.subr.mxu0 0.0
  %700 = vmatpush1.msra.mxu0 0.0
  %701 = vmatprep.subr.mxu0 0.0
  %702 = vmatpush1.msra.mxu0 0.0
  %703 = vmatprep.subr.mxu0 0.0
  %704 = vmatpush1.msra.mxu0 0.0
  %705 = vmatprep.subr.mxu0 0.0
  %706 = vmatpush1.msra.mxu0 0.0
  %707 = vmatprep.subr.mxu0 0.0
  %708 = vmatpush1.msra.mxu0 0.0
  %709 = vmatprep.subr.mxu0 0.0
  %710 = vmatpush1.msra.mxu0 0.0
  %711 = vmatprep.mubr.f32.mxu0 0.0
  %712 = vmatmul.mubr.f32.gmra.mrb[0].mxu0 %v558
  %v713 = vpop.f32.mrb[0].mxu0
  %v714 = vadd.f32 %v550, %v713
  %v715 = vpop.f32.mrb[0].mxu0
  %v716 = vadd.f32 %v550, %v715
  %717 = vmatprep.mubr.f32.mxu0 0.0
  %718 = vmatmul.mubr.f32.gmra.mrb[0].mxu0 %v560
  %v719 = vpop.f32.mrb[0].mxu0
  %v720 = vadd.f32 %v555, %v719
  %v721 = vpop.f32.mrb[0].mxu0
  %v722 = vadd.f32 %v555, %v721
  %723 = vdwg.mxu0
  %732 = vrot.lane.b32.xlu0 %v637, 120
  %v733 = vpop.permute.xlu0 %732
  %734 = vrot.lane.b32.xlu0 %v639, 120
  %v735 = vpop.permute.xlu0 %734
  %736 = vrot.lane.b32.xlu0 %v714, 120
  %v737 = vpop.permute.xlu0 %736
  %738 = vrot.lane.b32.xlu0 %v716, 120
  %v739 = vpop.permute.xlu0 %738
  %740 = vrot.lane.b32.xlu0 %v643, 120
  %v741 = vpop.permute.xlu0 %740
  %742 = vrot.lane.b32.xlu0 %v645, 120
  %v743 = vpop.permute.xlu0 %742
  %744 = vrot.lane.b32.xlu0 %v720, 120
  %v745 = vpop.permute.xlu0 %744
  %746 = vrot.lane.b32.xlu0 %v722, 120
  %v747 = vpop.permute.xlu0 %746
  %v748 = vsel %vm92, %v733, %v735
  %v749 = vsel %vm92, %v735, %v737
  %v750 = vsel %vm92, %v737, %v739
  %v751 = vsel %vm92, %v741, %v743
  %v752 = vsel %vm92, %v743, %v745
  %v753 = vsel %vm92, %v745, %v747
  %v762 = vmax.f32 %v637, %v748
  %v763 = vmax.f32 %v639, %v749
  %v764 = vmax.f32 %v714, %v750
  %v765 = vmax.f32 %v716, %v739
  %v766 = vmax.f32 %v643, %v751
  %v767 = vmax.f32 %v645, %v752
  %v768 = vmax.f32 %v720, %v753
  %v769 = vmax.f32 %v722, %v747
  %770 = vrot.lane.b32.xlu0 %v637, 112
  %v771 = vpop.permute.xlu0 %770
  %772 = vrot.lane.b32.xlu0 %v639, 112
  %v773 = vpop.permute.xlu0 %772
  %774 = vrot.lane.b32.xlu0 %v714, 112
  %v775 = vpop.permute.xlu0 %774
  %776 = vrot.lane.b32.xlu0 %v716, 112
  %v777 = vpop.permute.xlu0 %776
  %778 = vrot.lane.b32.xlu0 %v643, 112
  %v779 = vpop.permute.xlu0 %778
  %780 = vrot.lane.b32.xlu0 %v645, 112
  %v781 = vpop.permute.xlu0 %780
  %782 = vrot.lane.b32.xlu0 %v720, 112
  %v783 = vpop.permute.xlu0 %782
  %784 = vrot.lane.b32.xlu0 %v722, 112
  %v785 = vpop.permute.xlu0 %784
  %v786 = vsel %vm418, %v771, %v773
  %v787 = vsel %vm418, %v773, %v775
  %v788 = vsel %vm418, %v775, %v777
  %v789 = vsel %vm418, %v779, %v781
  %v790 = vsel %vm418, %v781, %v783
  %v791 = vsel %vm418, %v783, %v785
  %v800 = vmax.f32 %v762, %v786
  %v801 = vmax.f32 %v763, %v787
  %v802 = vmax.f32 %v764, %v788
  %v803 = vmax.f32 %v765, %v777
  %v804 = vmax.f32 %v766, %v789
  %v805 = vmax.f32 %v767, %v790
  %v806 = vmax.f32 %v768, %v791
  %v807 = vmax.f32 %v769, %v785
  %808 = vrot.lane.b32.xlu0 %v637, 104
  %v809 = vpop.permute.xlu0 %808
  %810 = vrot.lane.b32.xlu0 %v639, 104
  %v811 = vpop.permute.xlu0 %810
  %812 = vrot.lane.b32.xlu0 %v714, 104
  %v813 = vpop.permute.xlu0 %812
  %814 = vrot.lane.b32.xlu0 %v716, 104
  %v815 = vpop.permute.xlu0 %814
  %816 = vrot.lane.b32.xlu0 %v643, 104
  %v817 = vpop.permute.xlu0 %816
  %818 = vrot.lane.b32.xlu0 %v645, 104
  %v819 = vpop.permute.xlu0 %818
  %820 = vrot.lane.b32.xlu0 %v720, 104
  %v821 = vpop.permute.xlu0 %820
  %822 = vrot.lane.b32.xlu0 %v722, 104
  %v823 = vpop.permute.xlu0 %822
  %v824 = vsel %vm519, %v809, %v811
  %v825 = vsel %vm519, %v811, %v813
  %v826 = vsel %vm519, %v813, %v815
  %v827 = vsel %vm519, %v817, %v819
  %v828 = vsel %vm519, %v819, %v821
  %v829 = vsel %vm519, %v821, %v823
  %v838 = vmax.f32 %v800, %v824
  %v839 = vmax.f32 %v801, %v825
  %v840 = vmax.f32 %v802, %v826
  %v841 = vmax.f32 %v803, %v815
  %v842 = vmax.f32 %v804, %v827
  %v843 = vmax.f32 %v805, %v828
  %v844 = vmax.f32 %v806, %v829
  %v845 = vmax.f32 %v807, %v823
  %846 = vrot.lane.b32.xlu0 %v637, 96
  %v847 = vpop.permute.xlu0 %846
  %848 = vrot.lane.b32.xlu0 %v639, 96
  %v849 = vpop.permute.xlu0 %848
  %850 = vrot.lane.b32.xlu0 %v714, 96
  %v851 = vpop.permute.xlu0 %850
  %852 = vrot.lane.b32.xlu0 %v716, 96
  %v853 = vpop.permute.xlu0 %852
  %854 = vrot.lane.b32.xlu0 %v643, 96
  %v855 = vpop.permute.xlu0 %854
  %856 = vrot.lane.b32.xlu0 %v645, 96
  %v857 = vpop.permute.xlu0 %856
  %858 = vrot.lane.b32.xlu0 %v720, 96
  %v859 = vpop.permute.xlu0 %858
  %860 = vrot.lane.b32.xlu0 %v722, 96
  %v861 = vpop.permute.xlu0 %860
  %v862 = vsel %vm535, %v847, %v849
  %v863 = vsel %vm535, %v849, %v851
  %v864 = vsel %vm535, %v851, %v853
  %v865 = vsel %vm535, %v855, %v857
  %v866 = vsel %vm535, %v857, %v859
  %v867 = vsel %vm535, %v859, %v861
  %v876 = vmax.f32 %v838, %v862
  %v877 = vmax.f32 %v839, %v863
  %v878 = vmax.f32 %v840, %v864
  %v879 = vmax.f32 %v841, %v853
  %v880 = vmax.f32 %v842, %v865
  %v881 = vmax.f32 %v843, %v866
  %v882 = vmax.f32 %v844, %v867
  %v883 = vmax.f32 %v845, %v861
  %v884 = vlaneseq
  %v885 = vshrl.u32 %v884, 7
  %v886 = vadd.s32 %v885, 8
  %v887 = vadd.s32 %v885, 16
  %v888 = vadd.s32 %v885, 24
  %v889 = vadd.s32 %v885, 32
  %v890 = vadd.s32 %v885, 40
  %v891 = vadd.s32 %v885, 48
  %v892 = vadd.s32 %v885, 56
  %v893 = vadd.s32 %v885, 64
  %v894 = vadd.s32 %v885, 72
  %v895 = vadd.s32 %v885, 80
  %v896 = vadd.s32 %v885, 88
  %v897 = vadd.s32 %v885, 96
  %v898 = vadd.s32 %v885, 104
  %v899 = vadd.s32 %v885, 112
  %v900 = vadd.s32 %v885, 120
  %v901 = vadd.s32 %v885, 128
  %v902 = vadd.s32 %v885, 136
  %v903 = vadd.s32 %v885, 144
  %v904 = vadd.s32 %v885, 152
  %v905 = vadd.s32 %v885, 160
  %v906 = vadd.s32 %v885, 168
  %v907 = vmul.u32 %v364, 16
  %vm908 = vcmp.eq.s32.totalorder %v885, %v907
  %vm909 = vcmp.eq.s32.totalorder %v886, %v907
  %vm910 = vcmp.eq.s32.totalorder %v887, %v907
  %vm911 = vcmp.eq.s32.totalorder %v888, %v907
  %vm912 = vcmp.eq.s32.totalorder %v889, %v907
  %vm913 = vcmp.eq.s32.totalorder %v890, %v907
  %vm914 = vcmp.eq.s32.totalorder %v891, %v907
  %vm915 = vcmp.eq.s32.totalorder %v892, %v907
  %vm916 = vcmp.eq.s32.totalorder %v893, %v907
  %vm917 = vcmp.eq.s32.totalorder %v894, %v907
  %vm918 = vcmp.eq.s32.totalorder %v895, %v907
  %vm919 = vcmp.eq.s32.totalorder %v896, %v907
  %vm920 = vcmp.eq.s32.totalorder %v897, %v907
  %vm921 = vcmp.eq.s32.totalorder %v898, %v907
  %vm922 = vcmp.eq.s32.totalorder %v899, %v907
  %vm923 = vcmp.eq.s32.totalorder %v900, %v907
  %vm924 = vcmp.eq.s32.totalorder %v901, %v907
  %vm925 = vcmp.eq.s32.totalorder %v902, %v907
  %vm926 = vcmp.eq.s32.totalorder %v903, %v907
  %vm927 = vcmp.eq.s32.totalorder %v904, %v907
  %vm928 = vcmp.eq.s32.totalorder %v905, %v907
  %vm929 = vcmp.eq.s32.totalorder %v906, %v907
  %v930 = vsel %vm908, 1.0, 0.0
  %v931 = vsel %vm909, 1.0, 0.0
  %v932 = vsel %vm910, 1.0, 0.0
  %v933 = vsel %vm911, 1.0, 0.0
  %v934 = vsel %vm912, 1.0, 0.0
  %v935 = vsel %vm913, 1.0, 0.0
  %v936 = vsel %vm914, 1.0, 0.0
  %v937 = vsel %vm915, 1.0, 0.0
  %v938 = vsel %vm916, 1.0, 0.0
  %v939 = vsel %vm917, 1.0, 0.0
  %v940 = vsel %vm918, 1.0, 0.0
  %v941 = vsel %vm919, 1.0, 0.0
  %v942 = vsel %vm920, 1.0, 0.0
  %v943 = vsel %vm921, 1.0, 0.0
  %v944 = vsel %vm922, 1.0, 0.0
  %v945 = vsel %vm923, 1.0, 0.0
  %v946 = vsel %vm924, 1.0, 0.0
  %v947 = vsel %vm925, 1.0, 0.0
  %v948 = vsel %vm926, 1.0, 0.0
  %v949 = vsel %vm927, 1.0, 0.0
  %v950 = vsel %vm928, 1.0, 0.0
  %v951 = vsel %vm929, 1.0, 0.0
  %vm952 = vcmask 392192
  %v954 = vsel %vm952, %v877, 0
  %v957 = vsel %vm952, %v881, 0
  %959 = vmatprep.subr.mxu0 0.0
  %960 = vmatpush1.msra.mxu0 %v930
  %961 = vmatprep.subr.mxu0 0.0
  %962 = vmatpush1.msra.mxu0 %v931
  %963 = vmatprep.subr.mxu0 0.0
  %964 = vmatpush1.msra.mxu0 %v932
  %965 = vmatprep.subr.mxu0 0.0
  %966 = vmatpush1.msra.mxu0 %v933
  %967 = vmatprep.subr.mxu0 0.0
  %968 = vmatpush1.msra.mxu0 %v934
  %969 = vmatprep.subr.mxu0 0.0
  %970 = vmatpush1.msra.mxu0 %v935
  %971 = vmatprep.subr.mxu0 0.0
  %972 = vmatpush1.msra.mxu0 %v936
  %973 = vmatprep.subr.mxu0 0.0
  %974 = vmatpush1.msra.mxu0 %v937
  %975 = vmatprep.subr.mxu0 0.0
  %976 = vmatpush1.msra.mxu0 %v938
  %977 = vmatprep.subr.mxu0 0.0
  %978 = vmatpush1.msra.mxu0 %v939
  %979 = vmatprep.subr.mxu0 0.0
  %980 = vmatpush1.msra.mxu0 %v940
  %981 = vmatprep.subr.mxu0 0.0
  %982 = vmatpush1.msra.mxu0 %v941
  %983 = vmatprep.subr.mxu0 0.0
  %984 = vmatpush1.msra.mxu0 %v942
  %985 = vmatprep.subr.mxu0 0.0
  %986 = vmatpush1.msra.mxu0 %v943
  %987 = vmatprep.subr.mxu0 0.0
  %988 = vmatpush1.msra.mxu0 %v944
  %989 = vmatprep.subr.mxu0 0.0
  %990 = vmatpush1.msra.mxu0 %v945
  %991 = vmatprep.subr.mxu0 0.0
  %992 = vmatpush1.msra.mxu0 %v946
  %993 = vmatprep.subr.mxu0 0.0
  %994 = vmatpush1.msra.mxu0 %v947
  %995 = vmatprep.subr.mxu0 0.0
  %996 = vmatpush1.msra.mxu0 %v948
  %997 = vmatprep.subr.mxu0 0.0
  %998 = vmatpush1.msra.mxu0 %v949
  %999 = vmatprep.subr.mxu0 0.0
  %1000 = vmatpush1.msra.mxu0 %v950
  %1001 = vmatprep.subr.mxu0 0.0
  %1002 = vmatpush1.msra.mxu0 %v951
  %1003 = vmatprep.subr.mxu0 0.0
  %1004 = vmatpush1.msra.mxu0 0.0
  %1005 = vmatprep.subr.mxu0 0.0
  %1006 = vmatpush1.msra.mxu0 0.0
  %1007 = vmatprep.subr.mxu0 0.0
  %1008 = vmatpush1.msra.mxu0 0.0
  %1009 = vmatprep.subr.mxu0 0.0
  %1010 = vmatpush1.msra.mxu0 0.0
  %1011 = vmatprep.subr.mxu0 0.0
  %1012 = vmatpush1.msra.mxu0 0.0
  %1013 = vmatprep.subr.mxu0 0.0
  %1014 = vmatpush1.msra.mxu0 0.0
  %1015 = vmatprep.subr.mxu0 0.0
  %1016 = vmatpush1.msra.mxu0 0.0
  %1017 = vmatprep.subr.mxu0 0.0
  %1018 = vmatpush1.msra.mxu0 0.0
  %1019 = vmatprep.subr.mxu0 0.0
  %1020 = vmatpush1.msra.mxu0 0.0
  %1021 = vmatprep.subr.mxu0 0.0
  %1022 = vmatpush1.msra.mxu0 0.0
  %1023 = vmatprep.mubr.f32.mxu0 %v954
  %1024 = vmatmul.mubr.f32.gmra.mrb[0].mxu0 %v876
  %v1025 = vpop.f32.mrb[0].mxu0
  %v1026 = vadd.f32 0.0, %v1025
  %v1027 = vpop.f32.mrb[0].mxu0
  %1028 = vmatprep.mubr.f32.mxu0 %v957
  %1029 = vmatmul.mubr.f32.gmra.mrb[0].mxu0 %v880
  %v1030 = vpop.f32.mrb[0].mxu0
  %v1031 = vadd.f32 0.0, %v1030
  %v1032 = vpop.f32.mrb[0].mxu0
  %1033 = vdwg.mxu0
  %v1035 = vsel %vm952, %v879, 0
  %v1038 = vsel %vm952, %v883, 0
  %1040 = vmatprep.subr.mxu0 0.0
  %1041 = vmatpush1.msra.mxu0 %v930
  %1042 = vmatprep.subr.mxu0 0.0
  %1043 = vmatpush1.msra.mxu0 %v931
  %1044 = vmatprep.subr.mxu0 0.0
  %1045 = vmatpush1.msra.mxu0 %v932
  %1046 = vmatprep.subr.mxu0 0.0
  %1047 = vmatpush1.msra.mxu0 %v933
  %1048 = vmatprep.subr.mxu0 0.0
  %1049 = vmatpush1.msra.mxu0 %v934
  %1050 = vmatprep.subr.mxu0 0.0
  %1051 = vmatpush1.msra.mxu0 %v935
  %1052 = vmatprep.subr.mxu0 0.0
  %1053 = vmatpush1.msra.mxu0 %v936
  %1054 = vmatprep.subr.mxu0 0.0
  %1055 = vmatpush1.msra.mxu0 %v937
  %1056 = vmatprep.subr.mxu0 0.0
  %1057 = vmatpush1.msra.mxu0 %v938
  %1058 = vmatprep.subr.mxu0 0.0
  %1059 = vmatpush1.msra.mxu0 %v939
  %1060 = vmatprep.subr.mxu0 0.0
  %1061 = vmatpush1.msra.mxu0 %v940
  %1062 = vmatprep.subr.mxu0 0.0
  %1063 = vmatpush1.msra.mxu0 %v941
  %1064 = vmatprep.subr.mxu0 0.0
  %1065 = vmatpush1.msra.mxu0 %v942
  %1066 = vmatprep.subr.mxu0 0.0
  %1067 = vmatpush1.msra.mxu0 %v943
  %1068 = vmatprep.subr.mxu0 0.0
  %1069 = vmatpush1.msra.mxu0 %v944
  %1070 = vmatprep.subr.mxu0 0.0
  %1071 = vmatpush1.msra.mxu0 %v945
  %1072 = vmatprep.subr.mxu0 0.0
  %1073 = vmatpush1.msra.mxu0 %v946
  %1074 = vmatprep.subr.mxu0 0.0
  %1075 = vmatpush1.msra.mxu0 %v947
  %1076 = vmatprep.subr.mxu0 0.0
  %1077 = vmatpush1.msra.mxu0 %v948
  %1078 = vmatprep.subr.mxu0 0.0
  %1079 = vmatpush1.msra.mxu0 %v949
  %1080 = vmatprep.subr.mxu0 0.0
  %1081 = vmatpush1.msra.mxu0 %v950
  %1082 = vmatprep.subr.mxu0 0.0
  %1083 = vmatpush1.msra.mxu0 %v951
  %1084 = vmatprep.subr.mxu0 0.0
  %1085 = vmatpush1.msra.mxu0 0.0
  %1086 = vmatprep.subr.mxu0 0.0
  %1087 = vmatpush1.msra.mxu0 0.0
  %1088 = vmatprep.subr.mxu0 0.0
  %1089 = vmatpush1.msra.mxu0 0.0
  %1090 = vmatprep.subr.mxu0 0.0
  %1091 = vmatpush1.msra.mxu0 0.0
  %1092 = vmatprep.subr.mxu0 0.0
  %1093 = vmatpush1.msra.mxu0 0.0
  %1094 = vmatprep.subr.mxu0 0.0
  %1095 = vmatpush1.msra.mxu0 0.0
  %1096 = vmatprep.subr.mxu0 0.0
  %1097 = vmatpush1.msra.mxu0 0.0
  %1098 = vmatprep.subr.mxu0 0.0
  %1099 = vmatpush1.msra.mxu0 0.0
  %1100 = vmatprep.subr.mxu0 0.0
  %1101 = vmatpush1.msra.mxu0 0.0
  %1102 = vmatprep.subr.mxu0 0.0
  %1103 = vmatpush1.msra.mxu0 0.0
  %1104 = vmatprep.mubr.f32.mxu0 %v1035
  %1105 = vmatmul.mubr.f32.gmra.mrb[0].mxu0 %v878
  %v1106 = vpop.f32.mrb[0].mxu0
  %v1107 = vadd.f32 0.0, %v1106
  %v1108 = vpop.f32.mrb[0].mxu0
  %1109 = vmatprep.mubr.f32.mxu0 %v1038
  %1110 = vmatmul.mubr.f32.gmra.mrb[0].mxu0 %v882
  %v1111 = vpop.f32.mrb[0].mxu0
  %v1112 = vadd.f32 0.0, %v1111
  %v1113 = vpop.f32.mrb[0].mxu0
  %1114 = vdwg.mxu0
  %1117 = vrot.lane.b32.xlu0 %v1107, 11
  %v1118 = vpop.permute.xlu0 %1117
  %1119 = vrot.lane.b32.xlu0 %v1112, 11
  %v1120 = vpop.permute.xlu0 %1119
  %vm1123 = vcmask 89088
  %v1124 = vsel %vm1123, %v1026, %v1118
  %v1125 = vsel %vm1123, %v1031, %v1120
  %v1126 = vmul.f32 %v1124, %v1124
  %v1127 = vmul.f32 %v1125, %v1125
  %vm1128 = vcmask 179200
  %v1129 = vsel %vm1128, %v1124, 0.0
  %1130 = vadd.xlane.f32.xlu0 %v1129
  %v1131 = vpop.xlane.xlu0 %1130
  %v1132 = vsel %vm1128, %v1125, 0.0
  %1133 = vadd.xlane.f32.xlu0 %v1132
  %v1134 = vpop.xlane.xlu0 %1133
  %v1135 = vsel %vm1128, %v1126, 0.0
  %1136 = vadd.xlane.f32.xlu0 %v1135
  %v1137 = vpop.xlane.xlu0 %1136
  %v1138 = vsel %vm1128, %v1127, 0.0
  %1139 = vadd.xlane.f32.xlu0 %v1138
  %v1140 = vpop.xlane.xlu0 %1139
  %v1141 = vmul.f32 %v1131, 0.045454547
  %v1142 = vmul.f32 %v1134, 0.045454547
  %v1143 = vmul.f32 %v1137, 0.045454547
  %v1144 = vmul.f32 %v1140, 0.045454547
  %v1145 = vmul.f32 %v1141, %v1141
  %v1146 = vmul.f32 %v1142, %v1142
  %v1147 = vsub.f32 %v1143, %v1145
  %v1148 = vsub.f32 %v1144, %v1146
  %v1149 = vadd.f32 %v1147, 1e-05
  %v1150 = vadd.f32 %v1148, 1e-05
  %v1151 = vrsqrt.pop %v1149
  %v1152 = vrsqrt.pop %v1150
  %v1153 = vmul.f32 %v12, %v1151
  %v1154 = vmul.f32 %v13, %v1152
  %v1155 = vmul.f32 %v1141, %v1153
  %v1156 = vmul.f32 %v1142, %v1154
  %1159 = vrot.lane.b32.xlu0 %v1155, 1
  %v1160 = vpop.permute.xlu0 %1159
  %1161 = vrot.lane.b32.xlu0 %v1156, 1
  %v1162 = vpop.permute.xlu0 %1161
  %v1165 = vsub.f32 %v12, %v1160
  %v1166 = vsub.f32 %v13, %v1162
  %1168 = vset.pattern.permute.xlu0 21
  %1169 = vperm.xlu0 %1168, %v1153
  %v1170 = vpop.permute.xlu0 %1169
  %1173 = vset.pattern.permute.xlu0 21
  %1174 = vperm.xlu0 %1173, %v1154
  %v1175 = vpop.permute.xlu0 %1174
  %v1177 = vmul.f32 %v1026, %v1170
  %v1178 = vmul.f32 %v1031, %v1175
  %1180 = vset.pattern.permute.xlu0 22
  %1181 = vperm.xlu0 %1180, %v1165
  %v1182 = vpop.permute.xlu0 %1181
  %1185 = vset.pattern.permute.xlu0 22
  %1186 = vperm.xlu0 %1185, %v1166
  %v1187 = vpop.permute.xlu0 %1186
  %v1189 = vadd.f32 %v1177, %v1182
  %v1190 = vadd.f32 %v1178, %v1187
  %vm1191 = vcmp.gt.f32.partialorder %v1189, 0.0
  %vm1192 = vcmp.gt.f32.partialorder %v1190, 0.0
  %v1193 = vmul.f32 %v1189, 0.2
  %v1194 = vmul.f32 %v1190, 0.2
  %v1195 = vsel %vm1191, %v1189, %v1193
  %v1196 = vsel %vm1192, %v1190, %v1194
  %1197 = vst.msk [vmem:[%s2] sm:$0xff] %vm1123, %v1195
  %1198 = vst.msk [vmem:[%s2 + $0x8] sm:$0xff] %vm1123, %v1196
  %v1199 = vmul.f32 %v1107, %v1170
  %v1200 = vmul.f32 %v1112, %v1175
  %v1201 = vadd.f32 %v1199, %v1182
  %v1202 = vadd.f32 %v1200, %v1187
  %vm1203 = vcmp.gt.f32.partialorder %v1201, 0.0
  %vm1204 = vcmp.gt.f32.partialorder %v1202, 0.0
  %v1205 = vmul.f32 %v1201, 0.2
  %v1206 = vmul.f32 %v1202, 0.2
  %v1207 = vsel %vm1203, %v1201, %v1205
  %v1208 = vsel %vm1204, %v1202, %v1206
  %1209 = vst.msk [vmem:[%s2 + $0x10] sm:$0xff] %vm1123, %v1207
  %1210 = vst.msk [vmem:[%s2 + $0x18] sm:$0xff] %vm1123, %v1208
  // Predicated region
  $region10: #{downsampling_forward.1} parent=0 // pred_check
    _
  $region11: #{downsampling_forward.1} parent=0 // pred_check_branch
    %1212 = sbr.rel (0) target = $region13
  $region12: #{downsampling_forward.1} parent=0 // pred_region
    _
  $region13: #{downsampling_forward.1} parent=0 // pred_fallthru
    _
  // Predicated region
  $region14: #{downsampling_forward.1} parent=0 // pred_check
    _
  $region15: #{downsampling_forward.1} parent=0 // pred_check_branch
    %1214 = sbr.rel (0) target = $region17
  $region16: #{downsampling_forward.1} parent=0 // pred_region
    _
  $region17: #{downsampling_forward.1} parent=0 // pred_fallthru
    _

</llo_original>
